<compile_context>
chip_gen: v7x
topology: tpu7x:2x2x1
jax: 0.10.0
libtpu: 0.0.40
codegen_flags: <defaults>
</compile_context>

<pallas_src>
import jax
import jax.numpy as jnp
from jax.experimental import pallas as pl
from jax.experimental.pallas import tpu as pltpu


def time_embedding_kernel(x_ref, w1_ref, b1_ref, w2_ref, b2_ref, o_ref, h_ref):
    # linear_1 + SiLU only once (grid step 0); result persists in VMEM scratch.
    @pl.when(pl.program_id(0) == 0)
    def _():
        h = jnp.dot(x_ref[...].astype(jnp.bfloat16), w1_ref[...],
                    preferred_element_type=jnp.float32)
        h = h + b1_ref[...]                      # (1, hidden) broadcasts over B
        h = h * jax.nn.sigmoid(h)                # SiLU
        h_ref[...] = h.astype(h_ref.dtype)       # keep as bf16 for the 2nd dot

    # linear_2 on the current N-tile of w2 / b2 / output.
    y = jnp.dot(h_ref[...], w2_ref[...], preferred_element_type=jnp.float32)
    y = y + b2_ref[...]
    o_ref[...] = y.astype(o_ref.dtype)


def _pick_tile_n(hidden: int) -> int:
    # Lane-dense output tiles; 256-512 per the perf review, fall back to the
    # full width for small (test-size) hidden dims.
    for tn in (512, 256, 128):
        if hidden % tn == 0:
            return tn
    return hidden


def time_embedding(x, w1, b1, w2, b2):
    """Fused linear -> SiLU -> linear.

    x : (B, n_embed) float32
    w1: (n_embed, 4*n_embed), b1: (1, 4*n_embed)
    w2: (4*n_embed, 4*n_embed), b2: (1, 4*n_embed)
    """
    B, n_embed = x.shape
    hidden = w1.shape[1]
    tn = _pick_tile_n(hidden)
    grid = (hidden // tn,)

    # Stream weights as bf16 (memory-bound kernel); biases stay f32 (tiny).
    x = x.astype(jnp.float32)
    w1 = w1.astype(jnp.bfloat16)
    w2 = w2.astype(jnp.bfloat16)
    b1 = b1.astype(jnp.float32)
    b2 = b2.astype(jnp.float32)

    # VMEM working set: double-buffered inputs/outputs + persistent scratch.
    est_bytes = (
        2 * (x.size * 4 + w1.size * 2 + b1.size * 4
             + hidden * tn * 2 + tn * 4 + B * tn * 4)
        + B * hidden * 2
    )
    vmem_limit = int(min(max(4 * est_bytes, 16 * 1024 * 1024),
                         48 * 1024 * 1024))

    return pl.pallas_call(
        time_embedding_kernel,
        out_shape=jax.ShapeDtypeStruct((B, hidden), jnp.float32),
        grid_spec=pltpu.PrefetchScalarGridSpec(
            num_scalar_prefetch=0,
            grid=grid,
            in_specs=[
                pl.BlockSpec((B, n_embed), lambda j: (0, 0)),   # x (resident)
                pl.BlockSpec((n_embed, hidden), lambda j: (0, 0)),  # w1 (resident)
                pl.BlockSpec((1, hidden), lambda j: (0, 0)),    # b1 (resident)
                pl.BlockSpec((hidden, tn), lambda j: (0, j)),   # w2 tile (streamed)
                pl.BlockSpec((1, tn), lambda j: (0, j)),        # b2 tile
            ],
            out_specs=pl.BlockSpec((B, tn), lambda j: (0, j)),  # lane-dense tile
            scratch_shapes=[pltpu.VMEM((B, hidden), jnp.bfloat16)],
        ),
        compiler_params=pltpu.CompilerParams(
            dimension_semantics=("arbitrary",),   # step 0 produces h for all steps
            vmem_limit_bytes=vmem_limit,
        ),
    )(x, w1, b1, w2, b2)


def _init_linear(key, in_features, out_features):
    """Deterministic PyTorch-style nn.Linear init (uniform +- 1/sqrt(in))."""
    kw, kb = jax.random.split(key)
    bound = 1.0 / (in_features ** 0.5)
    # stored as (in, out) == PyTorch weight.T
    w = jax.random.uniform(kw, (in_features, out_features), jnp.float32,
                           minval=-bound, maxval=bound)
    b = jax.random.uniform(kb, (1, out_features), jnp.float32,
                           minval=-bound, maxval=bound)
    return w, b


if __name__ == "__main__":
    n_embed = 32          # small synthetic size (SD uses 320)
    batch = 8
    hidden = 4 * n_embed

    key = jax.random.PRNGKey(0)
    kx, k1, k2 = jax.random.split(key, 3)

    x = jax.random.normal(kx, (batch, n_embed), jnp.float32)
    w1, b1 = _init_linear(k1, n_embed, hidden)
    w2, b2 = _init_linear(k2, hidden, hidden)

    out = time_embedding(x, w1, b1, w2, b2)
    out = jax.block_until_ready(out)
    assert out.shape == (batch, hidden)

    # Reference modeling the kernel's bf16 weight streaming (f32 accumulation).
    w1b = w1.astype(jnp.bfloat16).astype(jnp.float32)
    w2b = w2.astype(jnp.bfloat16).astype(jnp.float32)
    xb = x.astype(jnp.bfloat16).astype(jnp.float32)
    h_ref = xb @ w1b + b1
    h_ref = h_ref * jax.nn.sigmoid(h_ref)
    h_ref = h_ref.astype(jnp.bfloat16).astype(jnp.float32)   # bf16 scratch
    ref = h_ref @ w2b + b2
    assert jnp.allclose(out, ref, atol=1e-2, rtol=1e-2), "mismatch vs reference"

    # Sanity vs pure-f32 math (bf16 quantization error only).
    h_f32 = x @ w1 + b1
    h_f32 = h_f32 * jax.nn.sigmoid(h_f32)
    ref_f32 = h_f32 @ w2 + b2
    assert jnp.allclose(out, ref_f32, atol=5e-2, rtol=5e-2), "bf16 error too large"

    print("KERNEL_OK")
</pallas_src>

<mosaic_0001>
module attributes {stable_mosaic.version = 11 : i64} {
  func.func @time_embedding_kernel(%arg0: i32, %arg1: memref<8x32xf32, #tpu.memory_space<vmem>>, %arg2: memref<32x128xbf16, #tpu.memory_space<vmem>>, %arg3: memref<1x128xf32, #tpu.memory_space<vmem>>, %arg4: memref<128x128xbf16, #tpu.memory_space<vmem>>, %arg5: memref<1x128xf32, #tpu.memory_space<vmem>>, %arg6: memref<8x128xf32, #tpu.memory_space<vmem>>, %arg7: memref<8x128xbf16, #tpu.memory_space<vmem>>) attributes {dimension_semantics = [#tpu.dimension_semantics<arbitrary>], iteration_bounds = array<i64: 1>, scalar_prefetch = 0 : i64, scratch_operands = 1 : i64, tpu.core_type = #tpu.core_type<tc>, window_params = [{pipeline_mode = #tpu.pipeline_mode<synchronous>, transform_indices = @transform_0, window_bounds = array<i64: 8, 32>}, {pipeline_mode = #tpu.pipeline_mode<synchronous>, transform_indices = @transform_1, window_bounds = array<i64: 32, 128>}, {pipeline_mode = #tpu.pipeline_mode<synchronous>, transform_indices = @transform_2, window_bounds = array<i64: 1, 128>}, {transform_indices = @transform_3, window_bounds = array<i64: 128, 128>}, {transform_indices = @transform_4, window_bounds = array<i64: 1, 128>}, {transform_indices = @transform_5, window_bounds = array<i64: 8, 128>}]} {
    %c0_i32 = arith.constant 0 : i32
    %0 = arith.cmpi eq, %arg0, %c0_i32 : i32
    %1 = arith.extui %0 : i1 to i32
    %c0_i32_0 = arith.constant 0 : i32
    %2 = arith.cmpi ne, %1, %c0_i32_0 : i32
    scf.if %2 {
      %c0_8 = arith.constant 0 : index
      %c0_9 = arith.constant 0 : index
      %10 = vector.load %arg1[%c0_8, %c0_9] : memref<8x32xf32, #tpu.memory_space<vmem>>, vector<8x32xf32>
      %11 = arith.truncf %10 : vector<8x32xf32> to vector<8x32xbf16>
      %c0_10 = arith.constant 0 : index
      %c0_11 = arith.constant 0 : index
      %12 = vector.load %arg2[%c0_10, %c0_11] : memref<32x128xbf16, #tpu.memory_space<vmem>>, vector<32x128xbf16>
      %cst_12 = arith.constant dense<0.000000e+00> : vector<8x128xf32>
      %13 = tpu.matmul %11, %12, %cst_12 {dimension_numbers = #tpu.dot_dimension_numbers<[1], [0], [0], [1], [0, 0, 1, 1], [], []>} : vector<8x32xbf16>, vector<32x128xbf16>, vector<8x128xf32> -> vector<8x128xf32>
      %c0_13 = arith.constant 0 : index
      %c0_14 = arith.constant 0 : index
      %14 = vector.load %arg3[%c0_13, %c0_14] : memref<1x128xf32, #tpu.memory_space<vmem>>, vector<1x128xf32>
      %15 = vector.broadcast %14 : vector<1x128xf32> to vector<8x128xf32>
      %16 = arith.addf %13, %15 : vector<8x128xf32>
      %17 = arith.negf %16 : vector<8x128xf32>
      %18 = math.exp %17 : vector<8x128xf32>
      %cst_15 = arith.constant 1.000000e+00 : f32
      %19 = vector.broadcast %cst_15 : f32 to vector<8x128xf32>
      %20 = arith.addf %19, %18 : vector<8x128xf32>
      %21 = arith.divf %19, %20 : vector<8x128xf32>
      %22 = arith.mulf %16, %21 : vector<8x128xf32>
      %23 = arith.truncf %22 : vector<8x128xf32> to vector<8x128xbf16>
      %c0_16 = arith.constant 0 : index
      %c0_17 = arith.constant 0 : index
      %24 = vector.load %arg7[%c0_16, %c0_17] : memref<8x128xbf16, #tpu.memory_space<vmem>>, vector<8x128xbf16>
      tpu.vector_store %arg7[%c0_16, %c0_17], %23 {strides = array<i32>} : memref<8x128xbf16, #tpu.memory_space<vmem>>, vector<8x128xbf16>,
    } else {
    }
    %c0 = arith.constant 0 : index
    %c0_1 = arith.constant 0 : index
    %3 = vector.load %arg7[%c0, %c0_1] : memref<8x128xbf16, #tpu.memory_space<vmem>>, vector<8x128xbf16>
    %c0_2 = arith.constant 0 : index
    %c0_3 = arith.constant 0 : index
    %4 = vector.load %arg4[%c0_2, %c0_3] : memref<128x128xbf16, #tpu.memory_space<vmem>>, vector<128x128xbf16>
    %cst = arith.constant dense<0.000000e+00> : vector<8x128xf32>
    %5 = tpu.matmul %3, %4, %cst {dimension_numbers = #tpu.dot_dimension_numbers<[1], [0], [0], [1], [0, 0, 1, 1], [], []>} : vector<8x128xbf16>, vector<128x128xbf16>, vector<8x128xf32> -> vector<8x128xf32>
    %c0_4 = arith.constant 0 : index
    %c0_5 = arith.constant 0 : index
    %6 = vector.load %arg5[%c0_4, %c0_5] : memref<1x128xf32, #tpu.memory_space<vmem>>, vector<1x128xf32>
    %7 = vector.broadcast %6 : vector<1x128xf32> to vector<8x128xf32>
    %8 = arith.addf %5, %7 : vector<8x128xf32>
    %c0_6 = arith.constant 0 : index
    %c0_7 = arith.constant 0 : index
    %9 = vector.load %arg6[%c0_6, %c0_7] : memref<8x128xf32, #tpu.memory_space<vmem>>, vector<8x128xf32>
    tpu.vector_store %arg6[%c0_6, %c0_7], %8 {strides = array<i32>} : memref<8x128xf32, #tpu.memory_space<vmem>>, vector<8x128xf32>,
    return
  }
  func.func @transform_0(%arg0: i32) -> (i32, i32) {
    %c0_i32 = arith.constant 0 : i32
    %c0_i32_0 = arith.constant 0 : i32
    %c0_i32_1 = arith.constant 0 : i32
    return %c0_i32, %c0_i32_0 : i32, i32
  }
  func.func @transform_1(%arg0: i32) -> (i32, i32) {
    %c0_i32 = arith.constant 0 : i32
    %c0_i32_0 = arith.constant 0 : i32
    %c0_i32_1 = arith.constant 0 : i32
    return %c0_i32, %c0_i32_0 : i32, i32
  }
  func.func @transform_2(%arg0: i32) -> (i32, i32) {
    %c0_i32 = arith.constant 0 : i32
    %c0_i32_0 = arith.constant 0 : i32
    %c0_i32_1 = arith.constant 0 : i32
    return %c0_i32, %c0_i32_0 : i32, i32
  }
  func.func @transform_3(%arg0: i32) -> (i32, i32) {
    %c0_i32 = arith.constant 0 : i32
    %c0_i32_0 = arith.constant 0 : i32
    return %c0_i32, %arg0 : i32, i32
  }
  func.func @transform_4(%arg0: i32) -> (i32, i32) {
    %c0_i32 = arith.constant 0 : i32
    %c0_i32_0 = arith.constant 0 : i32
    return %c0_i32, %arg0 : i32, i32
  }
  func.func @transform_5(%arg0: i32) -> (i32, i32) {
    %c0_i32 = arith.constant 0 : i32
    %c0_i32_0 = arith.constant 0 : i32
    return %c0_i32, %arg0 : i32, i32
  }
}

</mosaic_0001>

<llo_original>
// kernel: tpu_custom_call.1
$region0: #{tpu_custom_call.1}
  #allocation0 [shape = 'u32[]', space=smem, size = 0x4, offset = 0x4, fixed_abs, tag = 'smem constant byte address 0x4 - core index']
  #allocation1 [shape = 'u32[144,128]{1,0:T(1,128)}', space=vmem, size = 0x12000, scoped, tag = 'internal scratch']
  #allocation2 [shape = 'bf16[8,128]{1,0:T(8,128)(2,1)}', space=vmem, size = 0x800, scoped, tag = 'scratch operand']
  %s0 = inlined_call_operand.hbm [shape: f32[8,32], index: 0, kind: input, shape index: {}]
  %s1 = inlined_call_operand.hbm [shape: bf16[32,128], index: 1, kind: input, shape index: {}]
  %s2 = inlined_call_operand.vmem [shape: f32[1,128], index: 2, kind: input, shape index: {}]
  %s3 = inlined_call_operand.hbm [shape: bf16[128,128], index: 3, kind: input, shape index: {}]
  %s4 = inlined_call_operand.vmem [shape: f32[1,128], index: 4, kind: input, shape index: {}]
  %s5 = inlined_call_operand.hbm [shape: f32[8,128], index: 5, kind: output, shape index: {}]
  %s6 = sld [smem:[#allocation0]]
  $region46: #{tpu_custom_call.1} parent=0
    _
  %s8 = ssub.s32 1, %s6
  %s9 = scalar_select 0, %s8, %s6
  $region1: #{tpu_custom_call.1} parent=0
    #allocation3 [shape = 'u8[4096]{0}', space=vmem, size = 0x1000, scoped, tag = 'input window, operand 0, single buffered']
    #allocation4 [shape = 's32[1]{0}', space=sflag, size = 0x4, scoped, tag = 'scoped memory for tpu_custom_call.1']
    #allocation5 [shape = 's32[1]{0}', space=sflag, size = 0x4, scoped, tag = 'scoped memory for tpu_custom_call.1']
    #allocation6 [shape = 'u8[8192]{0}', space=vmem, size = 0x2000, scoped, tag = 'input window, operand 1, single buffered']
    #allocation7 [shape = 's32[1]{0}', space=sflag, size = 0x4, scoped, tag = 'scoped memory for tpu_custom_call.1']
    #allocation8 [shape = 'u8[32768]{0}', space=vmem, size = 0x8000, scoped, tag = 'input window, operand 3, single buffered']
    #allocation9 [shape = 'u8[4096]{0}', space=vmem, size = 0x1000, scoped, tag = 'output window, operand 0, single buffered']
    %10 = vsyncpa [#allocation4], 0
    %11 = vsyncpa [#allocation7], 0
    %12 = vsyncpa [#allocation5], 0
    // Predicated region
    $region2: #{tpu_custom_call.1} parent=1 // pred_check
      _
    $region3: #{tpu_custom_call.1} parent=1 // pred_check_branch
      %14 = sbr.rel (0) target = $region5
    $region4: #{tpu_custom_call.1} parent=1 // pred_region
      %s16 = ssub.s32 128, 128
      %17 = vsyncadd [#allocation4], %s16
      %s19 = sshll.u32 [#allocation3], 4
      %s20 = int_to_ptr.vmem [resolvable:$true] %s19
      %22 = dma.hbm_to_vmem [thread:$0]  %s0, 128, %s20, [#allocation4]
    $region5: #{tpu_custom_call.1} parent=1 // pred_fallthru
      _
    // Predicated region
    $region6: #{tpu_custom_call.1} parent=1 // pred_check
      _
    $region7: #{tpu_custom_call.1} parent=1 // pred_check_branch
      %24 = sbr.rel (0) target = $region9
    $region8: #{tpu_custom_call.1} parent=1 // pred_region
      %s26 = ssub.s32 256, 256
      %27 = vsyncadd [#allocation7], %s26
      %s28 = sshll.u32 [#allocation6], 4
      %s29 = int_to_ptr.vmem [resolvable:$true] %s28
      %34 = dma.hbm_to_vmem [thread:$0]  %s1, 256, %s29, [#allocation7], 64, 64, 4
    $region9: #{tpu_custom_call.1} parent=1 // pred_fallthru
      _
    // Predicated region
    $region10: #{tpu_custom_call.1} parent=1 // pred_check
      _
    $region11: #{tpu_custom_call.1} parent=1 // pred_check_branch
      %36 = sbr.rel (0) target = $region13
    $region12: #{tpu_custom_call.1} parent=1 // pred_region
      _
    $region13: #{tpu_custom_call.1} parent=1 // pred_fallthru
      _
    // Predicated region
    $region14: #{tpu_custom_call.1} parent=1 // pred_check
      _
    $region15: #{tpu_custom_call.1} parent=1 // pred_check_branch
      %38 = sbr.rel (0) target = $region17
    $region16: #{tpu_custom_call.1} parent=1 // pred_region
      %s40 = ssub.s32 1024, 1024
      %41 = vsyncadd [#allocation7], %s40
      %s42 = sshll.u32 [#allocation8], 4
      %s43 = int_to_ptr.vmem [resolvable:$true] %s42
      %48 = dma.hbm_to_vmem [thread:$0]  %s3, 1024, %s43, [#allocation7], 64, 64, 4
    $region17: #{tpu_custom_call.1} parent=1 // pred_fallthru
      _
    // Predicated region
    $region18: #{tpu_custom_call.1} parent=1 // pred_check
      _
    $region19: #{tpu_custom_call.1} parent=1 // pred_check_branch
      %50 = sbr.rel (0) target = $region21
    $region20: #{tpu_custom_call.1} parent=1 // pred_region
      _
    $region21: #{tpu_custom_call.1} parent=1 // pred_fallthru
      _
    // Predicated region
    $region22: #{tpu_custom_call.1} parent=1 // pred_check
      _
    $region23: #{tpu_custom_call.1} parent=1 // pred_check_branch
      %52 = sbr.rel (0) target = $region25
    $region24: #{tpu_custom_call.1} parent=1 // pred_region
      %53 = dma.done [#allocation4], 128
    $region25: #{tpu_custom_call.1} parent=1 // pred_fallthru
      _
    // Predicated region
    $region26: #{tpu_custom_call.1} parent=1 // pred_check
      _
    $region27: #{tpu_custom_call.1} parent=1 // pred_check_branch
      %55 = sbr.rel (0) target = $region29
    $region28: #{tpu_custom_call.1} parent=1 // pred_region
      %56 = dma.done [#allocation7], 256
    $region29: #{tpu_custom_call.1} parent=1 // pred_fallthru
      _
    // Predicated region
    $region30: #{tpu_custom_call.1} parent=1 // pred_check
      _
    $region31: #{tpu_custom_call.1} parent=1 // pred_check_branch
      %58 = sbr.rel (0) target = $region33
    $region32: #{tpu_custom_call.1} parent=1 // pred_region
      %59 = dma.done [#allocation7], 1024
    $region33: #{tpu_custom_call.1} parent=1 // pred_fallthru
      _
    %p61 = scmp.eq.s32.totalorder 0, 0
    // Predicated region
    $region34: #{tpu_custom_call.1} parent=1 // pred_check
      %p62 = pneg %p61
    $region35: #{tpu_custom_call.1} parent=1 // pred_check_branch
      %64 = sbr.rel (%p62) target = $region37
    $region36: #{tpu_custom_call.1} parent=1 // pred_region
      %v65 = vld [vmem:[#allocation3] sm:$0xff]
      %v66 = vpack.c.bf16 %v65, %v65
      %v67 = vld [vmem:[#allocation6] sm:$0xf]
      %v68 = vld [vmem:[#allocation6 + $0x4] sm:$0xf]
      %v69 = vld [vmem:[#allocation6 + $0x8] sm:$0xf]
      %v70 = vld [vmem:[#allocation6 + $0xc] sm:$0xf]
      %v71 = vld [vmem:[%s2] sm:$0x1]
      %v73 = vlaneseq
      %v74 = vshrl.u32 %v73, 7
      %v75 = vsub.s32 0, %v74
      %v76 = vrot.slane %v71, %v75
      %v82 = vunpack.c.l.b16 %v67
      %v83 = vunpack.c.l.b16 %v68
      %v84 = vunpack.c.l.b16 %v69
      %v85 = vunpack.c.l.b16 %v70
      %v86 = vpack.c.b16 %v83, %v82
      %v87 = vpack.c.b16 %v85, %v84
      %vm90 = vcmask 261120
      %v92 = vsel %vm90, %v66, 0
      %94 = vmatprep.subr.bf16.mxu0 0
      %95 = vmatpush1.bf16.msra.mxu0 %v86
      %96 = vmatprep.subr.bf16.mxu0 0
      %97 = vmatpush1.bf16.msra.mxu0 %v87
      %98 = vmatprep.subr.bf16.mxu0 0
      %99 = vmatpush1.bf16.msra.mxu0 0
      %100 = vmatprep.subr.bf16.mxu0 0
      %101 = vmatpush1.bf16.msra.mxu0 0
      %102 = vmatprep.subr.bf16.mxu0 0
      %103 = vmatpush1.bf16.msra.mxu0 0
      %104 = vmatprep.subr.bf16.mxu0 0
      %105 = vmatpush1.bf16.msra.mxu0 0
      %106 = vmatprep.subr.bf16.mxu0 0
      %107 = vmatpush1.bf16.msra.mxu0 0
      %108 = vmatprep.subr.bf16.mxu0 0
      %109 = vmatpush1.bf16.msra.mxu0 0
      %110 = vmatprep.subr.bf16.mxu0 0
      %111 = vmatpush1.bf16.msra.mxu0 0
      %112 = vmatprep.subr.bf16.mxu0 0
      %113 = vmatpush1.bf16.msra.mxu0 0
      %114 = vmatprep.subr.bf16.mxu0 0
      %115 = vmatpush1.bf16.msra.mxu0 0
      %116 = vmatprep.subr.bf16.mxu0 0
      %117 = vmatpush1.bf16.msra.mxu0 0
      %118 = vmatprep.subr.bf16.mxu0 0
      %119 = vmatpush1.bf16.msra.mxu0 0
      %120 = vmatprep.subr.bf16.mxu0 0
      %121 = vmatpush1.bf16.msra.mxu0 0
      %122 = vmatprep.subr.bf16.mxu0 0
      %123 = vmatpush1.bf16.msra.mxu0 0
      %124 = vmatprep.subr.bf16.mxu0 0
      %125 = vmatpush1.bf16.msra.mxu0 0
      %126 = vmatprep.mubr.bf16.mxu0 0
      %127 = vmatmul.mubr.bf16.gmra.mrb[0].mxu0 %v92
      %v128 = vpop.f32.mrb[0].mxu0
      %v129 = vadd.f32 %v76, %v128
      %v130 = vpop.f32.mrb[0].mxu0
      %v131 = vpop.f32.mrb[0].mxu0
      %v132 = vpop.f32.mrb[0].mxu0
      %133 = vdwg.mxu0
      %v134 = vxor.u32 %v129, 2147483648
      %v135 = vmul.f32 %v134, 1.442695
      %v136 = vpow.pop %v135
      %v137 = vadd.f32 %v136, 1.0
      %v138 = vrcp.pop %v137
      %v139 = vmul.f32 1.0, %v138
      %v140 = vmul.f32 %v129, %v139
      %v141 = vpack.c.bf16 %v140, %v140
      %142 = vst [vmem:[#allocation2] sm:$0xf] %v141
    $region37: #{tpu_custom_call.1} parent=1 // pred_fallthru
      _
    %v143 = vld [vmem:[#allocation2] sm:$0xf]
    %v144 = vld [vmem:[#allocation8] sm:$0xf]
    %v145 = vld [vmem:[#allocation8 + $0x4] sm:$0xf]
    %v146 = vld [vmem:[#allocation8 + $0x8] sm:$0xf]
    %v147 = vld [vmem:[#allocation8 + $0xc] sm:$0xf]
    %v148 = vld [vmem:[#allocation8 + $0x10] sm:$0xf]
    %v149 = vld [vmem:[#allocation8 + $0x14] sm:$0xf]
    %v150 = vld [vmem:[#allocation8 + $0x18] sm:$0xf]
    %v151 = vld [vmem:[#allocation8 + $0x1c] sm:$0xf]
    %v152 = vld [vmem:[#allocation8 + $0x20] sm:$0xf]
    %v153 = vld [vmem:[#allocation8 + $0x24] sm:$0xf]
    %v154 = vld [vmem:[#allocation8 + $0x28] sm:$0xf]
    %v155 = vld [vmem:[#allocation8 + $0x2c] sm:$0xf]
    %v156 = vld [vmem:[#allocation8 + $0x30] sm:$0xf]
    %v157 = vld [vmem:[#allocation8 + $0x34] sm:$0xf]
    %v158 = vld [vmem:[#allocation8 + $0x38] sm:$0xf]
    %v159 = vld [vmem:[#allocation8 + $0x3c] sm:$0xf]
    %v160 = vld [vmem:[%s4] sm:$0x1]
    %v162 = vlaneseq
    %v163 = vshrl.u32 %v162, 7
    %v164 = vsub.s32 0, %v163
    %v165 = vrot.slane %v160, %v164
    %v183 = vunpack.c.l.b16 %v144
    %v184 = vunpack.c.l.b16 %v145
    %v185 = vunpack.c.l.b16 %v146
    %v186 = vunpack.c.l.b16 %v147
    %v187 = vunpack.c.l.b16 %v148
    %v188 = vunpack.c.l.b16 %v149
    %v189 = vunpack.c.l.b16 %v150
    %v190 = vunpack.c.l.b16 %v151
    %v191 = vunpack.c.l.b16 %v152
    %v192 = vunpack.c.l.b16 %v153
    %v193 = vunpack.c.l.b16 %v154
    %v194 = vunpack.c.l.b16 %v155
    %v195 = vunpack.c.l.b16 %v156
    %v196 = vunpack.c.l.b16 %v157
    %v197 = vunpack.c.l.b16 %v158
    %v198 = vunpack.c.l.b16 %v159
    %v199 = vpack.c.b16 %v184, %v183
    %v200 = vpack.c.b16 %v186, %v185
    %v201 = vpack.c.b16 %v188, %v187
    %v202 = vpack.c.b16 %v190, %v189
    %v203 = vpack.c.b16 %v192, %v191
    %v204 = vpack.c.b16 %v194, %v193
    %v205 = vpack.c.b16 %v196, %v195
    %v206 = vpack.c.b16 %v198, %v197
    %215 = vmatprep.subr.bf16.mxu0 0
    %216 = vmatpush1.bf16.msra.mxu0 %v199
    %217 = vmatprep.subr.bf16.mxu0 0
    %218 = vmatpush1.bf16.msra.mxu0 %v200
    %219 = vmatprep.subr.bf16.mxu0 0
    %220 = vmatpush1.bf16.msra.mxu0 %v201
    %221 = vmatprep.subr.bf16.mxu0 0
    %222 = vmatpush1.bf16.msra.mxu0 %v202
    %223 = vmatprep.subr.bf16.mxu0 0
    %224 = vmatpush1.bf16.msra.mxu0 %v203
    %225 = vmatprep.subr.bf16.mxu0 0
    %226 = vmatpush1.bf16.msra.mxu0 %v204
    %227 = vmatprep.subr.bf16.mxu0 0
    %228 = vmatpush1.bf16.msra.mxu0 %v205
    %229 = vmatprep.subr.bf16.mxu0 0
    %230 = vmatpush1.bf16.msra.mxu0 %v206
    %231 = vmatprep.subr.bf16.mxu0 0
    %232 = vmatpush1.bf16.msra.mxu0 0
    %233 = vmatprep.subr.bf16.mxu0 0
    %234 = vmatpush1.bf16.msra.mxu0 0
    %235 = vmatprep.subr.bf16.mxu0 0
    %236 = vmatpush1.bf16.msra.mxu0 0
    %237 = vmatprep.subr.bf16.mxu0 0
    %238 = vmatpush1.bf16.msra.mxu0 0
    %239 = vmatprep.subr.bf16.mxu0 0
    %240 = vmatpush1.bf16.msra.mxu0 0
    %241 = vmatprep.subr.bf16.mxu0 0
    %242 = vmatpush1.bf16.msra.mxu0 0
    %243 = vmatprep.subr.bf16.mxu0 0
    %244 = vmatpush1.bf16.msra.mxu0 0
    %245 = vmatprep.subr.bf16.mxu0 0
    %246 = vmatpush1.bf16.msra.mxu0 0
    %247 = vmatprep.mubr.bf16.mxu0 0
    %248 = vmatmul.mubr.bf16.gmra.mrb[0].mxu0 %v143
    %v249 = vpop.f32.mrb[0].mxu0
    %v250 = vadd.f32 %v165, %v249
    %v251 = vpop.f32.mrb[0].mxu0
    %v252 = vpop.f32.mrb[0].mxu0
    %v253 = vpop.f32.mrb[0].mxu0
    %254 = vdwg.mxu0
    %255 = vst [vmem:[#allocation9] sm:$0xff] %v250
    // Predicated region
    $region38: #{tpu_custom_call.1} parent=1 // pred_check
      _
    $region39: #{tpu_custom_call.1} parent=1 // pred_check_branch
      %257 = sbr.rel (0) target = $region41
    $region40: #{tpu_custom_call.1} parent=1 // pred_region
      %s259 = ssub.s32 128, 128
      %260 = vsyncadd [#allocation5], %s259
      %s262 = sshll.u32 [#allocation9], 4
      %s263 = int_to_ptr.vmem [resolvable:$true] %s262
      %265 = dma.vmem_to_hbm [thread:$0]  %s263, 128, %s5, [#allocation5]
    $region41: #{tpu_custom_call.1} parent=1 // pred_fallthru
      _
    // Predicated region
    $region42: #{tpu_custom_call.1} parent=1 // pred_check
      _
    $region43: #{tpu_custom_call.1} parent=1 // pred_check_branch
      %267 = sbr.rel (0) target = $region45
    $region44: #{tpu_custom_call.1} parent=1 // pred_region
      %268 = dma.done [#allocation5], 128
    $region45: #{tpu_custom_call.1} parent=1 // pred_fallthru
      _
    %269 = vsyncpa [#allocation4], 1
    %270 = vsyncpa [#allocation7], 1
    %271 = vsyncpa [#allocation5], 1

</llo_original>
